<compile_context>
chip_gen: v5e
topology: v5e:2x2
jax: 0.10.0
libtpu: 0.0.40
codegen_flags: <defaults>
</compile_context>

<pallas_src>
import functools

import jax
import jax.numpy as jnp
from jax.experimental import pallas as pl
from jax.experimental.pallas import tpu as pltpu

BN_EPS = 1e-5
VMEM_LIMIT = 48 * 1024 * 1024


def _stats_kernel(x6_ref, gram_ref, csum_ref):
    """Pass 1: per-batch Gram matrix and column sums of x6 (stats of x13 derived later)."""
    t = pl.program_id(1)

    @pl.when(t == 0)
    def _init():
        gram_ref[...] = jnp.zeros_like(gram_ref)
        csum_ref[...] = jnp.zeros_like(csum_ref)

    x = x6_ref[0]                                   # [40, TILE] f32
    # Gram accumulated on the MXU: contraction over the spatial tile ("NT" pattern).
    gram_ref[0] += jax.lax.dot_general(
        x, x, dimension_numbers=(((1,), (1,)), ((), ())),
        preferred_element_type=jnp.float32)         # [40, 40]
    # Lane-wide column-sum partial: VALU adds over 128-lane chunks, no XLU per step.
    tile = x.shape[1]
    acc = x[:, :128]
    for j in range(1, tile // 128):
        acc = acc + x[:, j * 128:(j + 1) * 128]
    csum_ref[0] += acc                              # [40, 128]


def _apply_kernel(w4bn_ref, shift_ref, x6_ref, x26_ref, out_ref):
    """Pass 2: out = x26 + (w4_bn @ x6) + shift  (gate + conv + BN + residual folded)."""
    x13 = jnp.dot(w4bn_ref[0], x6_ref[0], preferred_element_type=jnp.float32)  # [24, TILE]
    out_ref[0] = x26_ref[0] + x13 + shift_ref[...]  # shift [24,1] broadcasts over lanes


def _pick_spatial_tile(s_pad, max_cols=16384):
    """Largest multiple-of-128 divisor of s_pad (itself a multiple of 128) <= max_cols."""
    units = s_pad // 128
    best = 1
    for d in range(1, min(units, max_cols // 128) + 1):
        if units % d == 0:
            best = d
    return best * 128


def fused_forward(x9, x6, x26, w3, b3, w4, gamma, beta, *, tile_cols=None):
    """x9:[N,10,1,1], x6:[N,40,H,W], x26:[N,24,H,W]  (NCHW, float32)."""
    N, c_in, H, W = x6.shape
    c_out = x26.shape[1]
    S = H * W
    S_pad = ((S + 127) // 128) * 128

    # Channel-major, lane-dense layout: pure reshapes; zero-pad spatial only if needed.
    x6_f = x6.reshape(N, c_in, S)
    x26_f = x26.reshape(N, c_out, S)
    padded = S_pad != S
    if padded:
        pad_cfg = ((0, 0), (0, 0), (0, S_pad - S))
        x6_f = jnp.pad(x6_f, pad_cfg)
        x26_f = jnp.pad(x26_f, pad_cfg)

    if tile_cols is None:
        tile_cols = _pick_spatial_tile(S_pad)
    assert S_pad % tile_cols == 0 and tile_cols % 128 == 0, (S_pad, tile_cols)
    n_tiles = S_pad // tile_cols

    # SE squeeze branch (tiny [N,40] math) folded into the 1x1-conv weight, per batch.
    s = jax.nn.sigmoid(x9.reshape(N, -1) @ w3.T + b3[None, :])   # [N, 40]
    w4_eff = w4[None, :, :] * s[:, None, :]                      # [N, 24, 40]

    # ---- pass 1: per-batch Gram / column-sum of x6 -----------------------------------
    gram, csum = pl.pallas_call(
        _stats_kernel,
        out_shape=(jax.ShapeDtypeStruct((N, c_in, c_in), jnp.float32),
                   jax.ShapeDtypeStruct((N, c_in, 128), jnp.float32)),
        grid=(N, n_tiles),
        in_specs=[pl.BlockSpec((1, c_in, tile_cols), lambda n, t: (n, 0, t))],
        out_specs=(pl.BlockSpec((1, c_in, c_in), lambda n, t: (n, 0, 0)),
                   pl.BlockSpec((1, c_in, 128), lambda n, t: (n, 0, 0))),
        compiler_params=pltpu.CompilerParams(
            dimension_semantics=("parallel", "arbitrary"),
            vmem_limit_bytes=VMEM_LIMIT),
    )(x6_f)

    # ---- BN folding from the Gram stats (tiny vector math, stays in XLA) -------------
    colsum = jnp.sum(csum, axis=2)                                # [N, 40]
    sum_c = jnp.einsum('noc,nc->o', w4_eff, colsum)               # [24]  sum_s x13
    wg = jnp.einsum('noc,ncd->nod', w4_eff, gram)                 # [N, 24, 40]
    sumsq_c = jnp.einsum('nod,nod->o', wg, w4_eff)                # [24]  sum_s x13^2
    count = jnp.float32(N * S)                                    # true count (pad = 0)
    mean = sum_c / count                                          # [24]
    var = jnp.maximum(sumsq_c / count - mean * mean, 0.0)         # [24] biased (training)
    scale = gamma * jax.lax.rsqrt(var + BN_EPS)                   # [24]
    shift = (beta - mean * scale).reshape(c_out, 1)               # [24, 1]
    w4_bn = w4_eff * scale[None, :, None]                         # [N, 24, 40]

    # ---- pass 2: out = x26 + (w4_bn @ x6) + shift -------------------------------------
    out_f = pl.pallas_call(
        _apply_kernel,
        out_shape=jax.ShapeDtypeStruct((N, c_out, S_pad), jnp.float32),
        grid=(N, n_tiles),
        in_specs=[
            pl.BlockSpec((1, c_out, c_in), lambda n, t: (n, 0, 0)),
            pl.BlockSpec((c_out, 1), lambda n, t: (0, 0)),
            pl.BlockSpec((1, c_in, tile_cols), lambda n, t: (n, 0, t)),
            pl.BlockSpec((1, c_out, tile_cols), lambda n, t: (n, 0, t)),
        ],
        out_specs=pl.BlockSpec((1, c_out, tile_cols), lambda n, t: (n, 0, t)),
        # Only alias when x26_f is a freshly-padded temporary; aliasing a non-donated
        # entry parameter would make XLA insert a defensive copy (extra HBM traffic).
        input_output_aliases=({3: 0} if padded else {}),
        compiler_params=pltpu.CompilerParams(
            dimension_semantics=("parallel", "parallel"),
            vmem_limit_bytes=VMEM_LIMIT),
    )(w4_bn, shift, x6_f, x26_f)

    if padded:
        out_f = out_f[:, :, :S]
    return out_f.reshape(N, c_out, H, W)


def reference_forward(x9, x6, x26, w3, b3, w4, gamma, beta):
    """Plain-JAX reference mirroring the PyTorch module (training-mode BN)."""
    x10 = jnp.einsum('oc,nchw->nohw', w3, x9) + b3[None, :, None, None]
    x11 = jax.nn.sigmoid(x10)
    x12 = x11 * x6
    x13 = jnp.einsum('oc,nchw->nohw', w4, x12)
    mean = jnp.mean(x13, axis=(0, 2, 3), keepdims=True)
    var = jnp.mean((x13 - mean) ** 2, axis=(0, 2, 3), keepdims=True)
    x14 = (x13 - mean) / jnp.sqrt(var + BN_EPS)
    x14 = x14 * gamma[None, :, None, None] + beta[None, :, None, None]
    return x26 + x14


if __name__ == "__main__":
    key = jax.random.PRNGKey(0)
    k1, k2, k3, k4, k5, k6, k7, k8 = jax.random.split(key, 8)

    # Deterministic parameters (shapes fixed by the module __init__).
    w3 = 0.1 * jax.random.normal(k4, (40, 10), dtype=jnp.float32)      # conv2d3 weight
    b3 = 0.05 * jax.random.normal(k5, (40,), dtype=jnp.float32)        # conv2d3 bias
    w4 = 0.1 * jax.random.normal(k6, (24, 40), dtype=jnp.float32)      # conv2d4 weight
    gamma = 1.0 + 0.1 * jax.random.normal(k7, (24,), dtype=jnp.float32)  # BN weight
    beta = 0.1 * jax.random.normal(k8, (24,), dtype=jnp.float32)         # BN bias

    # Case 1: multi-batch, multi-tile spatial grid (S % 128 == 0 path).
    N, H, W = 2, 32, 32
    x9 = jax.random.normal(k1, (N, 10, 1, 1), dtype=jnp.float32)
    x6 = jax.random.normal(k2, (N, 40, H, W), dtype=jnp.float32)
    x26 = jax.random.normal(k3, (N, 24, H, W), dtype=jnp.float32)

    fwd = jax.jit(functools.partial(fused_forward, tile_cols=256))
    out = jax.block_until_ready(fwd(x9, x6, x26, w3, b3, w4, gamma, beta))
    ref = reference_forward(x9, x6, x26, w3, b3, w4, gamma, beta)
    assert out.shape == (N, 24, H, W)
    err = jnp.max(jnp.abs(out - ref))
    assert jnp.allclose(out, ref, atol=1e-4, rtol=1e-4), f"case1 max abs err {err}"

    # Case 2: spatial size not a multiple of 128 (zero-padding path), auto tile size.
    N2, H2, W2 = 1, 7, 7
    x9b = jax.random.normal(k1, (N2, 10, 1, 1), dtype=jnp.float32)
    x6b = jax.random.normal(k2, (N2, 40, H2, W2), dtype=jnp.float32)
    x26b = jax.random.normal(k3, (N2, 24, H2, W2), dtype=jnp.float32)

    fwd2 = jax.jit(fused_forward)
    out2 = jax.block_until_ready(fwd2(x9b, x6b, x26b, w3, b3, w4, gamma, beta))
    ref2 = reference_forward(x9b, x6b, x26b, w3, b3, w4, gamma, beta)
    assert out2.shape == (N2, 24, H2, W2)
    err2 = jnp.max(jnp.abs(out2 - ref2))
    assert jnp.allclose(out2, ref2, atol=1e-4, rtol=1e-4), f"case2 max abs err {err2}"

    print("KERNEL_OK")
</pallas_src>

<mosaic_0001>
module attributes {stable_mosaic.version = 11 : i64} {
  func.func @_stats_kernel(%arg0: i32, %arg1: i32, %arg2: memref<1x40x256xf32, #tpu.memory_space<vmem>>, %arg3: memref<1x40x40xf32, #tpu.memory_space<vmem>>, %arg4: memref<1x40x128xf32, #tpu.memory_space<vmem>>) attributes {dimension_semantics = [#tpu.dimension_semantics<parallel>, #tpu.dimension_semantics<arbitrary>], iteration_bounds = array<i64: 2, 4>, scalar_prefetch = 0 : i64, scratch_operands = 0 : i64, tpu.core_type = #tpu.core_type<tc>, window_params = [{transform_indices = @transform_0, window_bounds = array<i64: 1, 40, 256>}, {transform_indices = @transform_1, window_bounds = array<i64: 1, 40, 40>}, {transform_indices = @transform_2, window_bounds = array<i64: 1, 40, 128>}]} {
    %c0_i32 = arith.constant 0 : i32
    %0 = arith.cmpi eq, %arg1, %c0_i32 : i32
    %1 = arith.extui %0 : i1 to i32
    %c0_i32_0 = arith.constant 0 : i32
    %2 = arith.cmpi ne, %1, %c0_i32_0 : i32
    scf.if %2 {
      %cst_15 = arith.constant 0.000000e+00 : f32
      %21 = vector.broadcast %cst_15 : f32 to vector<1x40x40xf32>
      %c0_16 = arith.constant 0 : index
      %c0_17 = arith.constant 0 : index
      %c0_18 = arith.constant 0 : index
      %22 = vector.load %arg3[%c0_16, %c0_17, %c0_18] : memref<1x40x40xf32, #tpu.memory_space<vmem>>, vector<1x40x40xf32>
      tpu.vector_store %arg3[%c0_16, %c0_17, %c0_18], %21 {strides = array<i32>} : memref<1x40x40xf32, #tpu.memory_space<vmem>>, vector<1x40x40xf32>,
      %cst_19 = arith.constant 0.000000e+00 : f32
      %23 = vector.broadcast %cst_19 : f32 to vector<1x40x128xf32>
      %c0_20 = arith.constant 0 : index
      %c0_21 = arith.constant 0 : index
      %c0_22 = arith.constant 0 : index
      %24 = vector.load %arg4[%c0_20, %c0_21, %c0_22] : memref<1x40x128xf32, #tpu.memory_space<vmem>>, vector<1x40x128xf32>
      tpu.vector_store %arg4[%c0_20, %c0_21, %c0_22], %23 {strides = array<i32>} : memref<1x40x128xf32, #tpu.memory_space<vmem>>, vector<1x40x128xf32>,
    } else {
    }
    %c0 = arith.constant 0 : index
    %c0_1 = arith.constant 0 : index
    %c0_2 = arith.constant 0 : index
    %3 = vector.load %arg2[%c0, %c0_1, %c0_2] : memref<1x40x256xf32, #tpu.memory_space<vmem>>, vector<1x40x256xf32>
    %4 = vector.shape_cast %3 : vector<1x40x256xf32> to vector<40x256xf32>
    %c0_3 = arith.constant 0 : index
    %c0_4 = arith.constant 0 : index
    %c0_5 = arith.constant 0 : index
    %5 = vector.load %arg3[%c0_3, %c0_4, %c0_5] : memref<1x40x40xf32, #tpu.memory_space<vmem>>, vector<1x40x40xf32>
    %6 = vector.shape_cast %5 : vector<1x40x40xf32> to vector<40x40xf32>
    %cst = arith.constant dense<0.000000e+00> : vector<40x40xf32>
    %7 = tpu.matmul %4, %4, %cst {dimension_numbers = #tpu.dot_dimension_numbers<[1], [1], [0], [0], [0, 0, 1, 0], [], []>} : vector<40x256xf32>, vector<40x256xf32>, vector<40x40xf32> -> vector<40x40xf32>
    %8 = arith.addf %6, %7 : vector<40x40xf32>
    %c0_6 = arith.constant 0 : index
    %c0_7 = arith.constant 0 : index
    %c0_8 = arith.constant 0 : index
    %9 = vector.load %arg3[%c0_6, %c0_7, %c0_8] : memref<1x40x40xf32, #tpu.memory_space<vmem>>, vector<1x40x40xf32>
    %10 = vector.shape_cast %9 : vector<1x40x40xf32> to vector<40x40xf32>
    %11 = vector.shape_cast %8 : vector<40x40xf32> to vector<1x40x40xf32>
    tpu.vector_store %arg3[%c0_6, %c0_7, %c0_8], %11 {strides = array<i32>} : memref<1x40x40xf32, #tpu.memory_space<vmem>>, vector<1x40x40xf32>,
    %12 = vector.extract_strided_slice %4 {offsets = [0, 0], sizes = [40, 128], strides = [1, 1]} : vector<40x256xf32> to vector<40x128xf32>
    %13 = vector.extract_strided_slice %4 {offsets = [0, 128], sizes = [40, 128], strides = [1, 1]} : vector<40x256xf32> to vector<40x128xf32>
    %14 = arith.addf %12, %13 : vector<40x128xf32>
    %c0_9 = arith.constant 0 : index
    %c0_10 = arith.constant 0 : index
    %c0_11 = arith.constant 0 : index
    %15 = vector.load %arg4[%c0_9, %c0_10, %c0_11] : memref<1x40x128xf32, #tpu.memory_space<vmem>>, vector<1x40x128xf32>
    %16 = vector.shape_cast %15 : vector<1x40x128xf32> to vector<40x128xf32>
    %17 = arith.addf %16, %14 : vector<40x128xf32>
    %c0_12 = arith.constant 0 : index
    %c0_13 = arith.constant 0 : index
    %c0_14 = arith.constant 0 : index
    %18 = vector.load %arg4[%c0_12, %c0_13, %c0_14] : memref<1x40x128xf32, #tpu.memory_space<vmem>>, vector<1x40x128xf32>
    %19 = vector.shape_cast %18 : vector<1x40x128xf32> to vector<40x128xf32>
    %20 = vector.shape_cast %17 : vector<40x128xf32> to vector<1x40x128xf32>
    tpu.vector_store %arg4[%c0_12, %c0_13, %c0_14], %20 {strides = array<i32>} : memref<1x40x128xf32, #tpu.memory_space<vmem>>, vector<1x40x128xf32>,
    return
  }
  func.func @transform_0(%arg0: i32, %arg1: i32) -> (i32, i32, i32) {
    %c0_i32 = arith.constant 0 : i32
    %c0_i32_0 = arith.constant 0 : i32
    return %arg0, %c0_i32, %arg1 : i32, i32, i32
  }
  func.func @transform_1(%arg0: i32, %arg1: i32) -> (i32, i32, i32) {
    %c0_i32 = arith.constant 0 : i32
    %c0_i32_0 = arith.constant 0 : i32
    %c0_i32_1 = arith.constant 0 : i32
    return %arg0, %c0_i32, %c0_i32_0 : i32, i32, i32
  }
  func.func @transform_2(%arg0: i32, %arg1: i32) -> (i32, i32, i32) {
    %c0_i32 = arith.constant 0 : i32
    %c0_i32_0 = arith.constant 0 : i32
    %c0_i32_1 = arith.constant 0 : i32
    return %arg0, %c0_i32, %c0_i32_0 : i32, i32, i32
  }
}

module attributes {stable_mosaic.version = 11 : i64} {
  func.func @_apply_kernel(%arg0: i32, %arg1: i32, %arg2: memref<1x24x40xf32, #tpu.memory_space<vmem>>, %arg3: memref<24x1xf32, #tpu.memory_space<vmem>>, %arg4: memref<1x40x256xf32, #tpu.memory_space<vmem>>, %arg5: memref<1x24x256xf32, #tpu.memory_space<vmem>>, %arg6: memref<1x24x256xf32, #tpu.memory_space<vmem>>) attributes {dimension_semantics = [#tpu.dimension_semantics<parallel>, #tpu.dimension_semantics<parallel>], iteration_bounds = array<i64: 2, 4>, scalar_prefetch = 0 : i64, scratch_operands = 0 : i64, tpu.core_type = #tpu.core_type<tc>, window_params = [{transform_indices = @transform_0, window_bounds = array<i64: 1, 24, 40>}, {pipeline_mode = #tpu.pipeline_mode<synchronous>, transform_indices = @transform_1, window_bounds = array<i64: 24, 1>}, {transform_indices = @transform_2, window_bounds = array<i64: 1, 40, 256>}, {transform_indices = @transform_3, window_bounds = array<i64: 1, 24, 256>}, {transform_indices = @transform_4, window_bounds = array<i64: 1, 24, 256>}]} {
    %c0 = arith.constant 0 : index
    %c0_0 = arith.constant 0 : index
    %c0_1 = arith.constant 0 : index
    %0 = vector.load %arg2[%c0, %c0_0, %c0_1] : memref<1x24x40xf32, #tpu.memory_space<vmem>>, vector<1x24x40xf32>
    %1 = vector.shape_cast %0 : vector<1x24x40xf32> to vector<24x40xf32>
    %c0_2 = arith.constant 0 : index
    %c0_3 = arith.constant 0 : index
    %c0_4 = arith.constant 0 : index
    %2 = vector.load %arg4[%c0_2, %c0_3, %c0_4] : memref<1x40x256xf32, #tpu.memory_space<vmem>>, vector<1x40x256xf32>
    %3 = vector.shape_cast %2 : vector<1x40x256xf32> to vector<40x256xf32>
    %cst = arith.constant dense<0.000000e+00> : vector<24x256xf32>
    %4 = tpu.matmul %1, %3, %cst {dimension_numbers = #tpu.dot_dimension_numbers<[1], [0], [0], [1], [0, 0, 1, 1], [], []>} : vector<24x40xf32>, vector<40x256xf32>, vector<24x256xf32> -> vector<24x256xf32>
    %c0_5 = arith.constant 0 : index
    %c0_6 = arith.constant 0 : index
    %c0_7 = arith.constant 0 : index
    %5 = vector.load %arg5[%c0_5, %c0_6, %c0_7] : memref<1x24x256xf32, #tpu.memory_space<vmem>>, vector<1x24x256xf32>
    %6 = vector.shape_cast %5 : vector<1x24x256xf32> to vector<24x256xf32>
    %7 = arith.addf %6, %4 : vector<24x256xf32>
    %c0_8 = arith.constant 0 : index
    %c0_9 = arith.constant 0 : index
    %8 = vector.load %arg3[%c0_8, %c0_9] : memref<24x1xf32, #tpu.memory_space<vmem>>, vector<24x1xf32>
    %9 = vector.broadcast %8 : vector<24x1xf32> to vector<24x256xf32>
    %10 = arith.addf %7, %9 : vector<24x256xf32>
    %c0_10 = arith.constant 0 : index
    %c0_11 = arith.constant 0 : index
    %c0_12 = arith.constant 0 : index
    %11 = vector.load %arg6[%c0_10, %c0_11, %c0_12] : memref<1x24x256xf32, #tpu.memory_space<vmem>>, vector<1x24x256xf32>
    %12 = vector.shape_cast %11 : vector<1x24x256xf32> to vector<24x256xf32>
    %13 = vector.shape_cast %10 : vector<24x256xf32> to vector<1x24x256xf32>
    tpu.vector_store %arg6[%c0_10, %c0_11, %c0_12], %13 {strides = array<i32>} : memref<1x24x256xf32, #tpu.memory_space<vmem>>, vector<1x24x256xf32>,
    return
  }
  func.func @transform_0(%arg0: i32, %arg1: i32) -> (i32, i32, i32) {
    %c0_i32 = arith.constant 0 : i32
    %c0_i32_0 = arith.constant 0 : i32
    %c0_i32_1 = arith.constant 0 : i32
    return %arg0, %c0_i32, %c0_i32_0 : i32, i32, i32
  }
  func.func @transform_1(%arg0: i32, %arg1: i32) -> (i32, i32) {
    %c0_i32 = arith.constant 0 : i32
    %c0_i32_0 = arith.constant 0 : i32
    %c0_i32_1 = arith.constant 0 : i32
    return %c0_i32, %c0_i32_0 : i32, i32
  }
  func.func @transform_2(%arg0: i32, %arg1: i32) -> (i32, i32, i32) {
    %c0_i32 = arith.constant 0 : i32
    %c0_i32_0 = arith.constant 0 : i32
    return %arg0, %c0_i32, %arg1 : i32, i32, i32
  }
  func.func @transform_3(%arg0: i32, %arg1: i32) -> (i32, i32, i32) {
    %c0_i32 = arith.constant 0 : i32
    %c0_i32_0 = arith.constant 0 : i32
    return %arg0, %c0_i32, %arg1 : i32, i32, i32
  }
  func.func @transform_4(%arg0: i32, %arg1: i32) -> (i32, i32, i32) {
    %c0_i32 = arith.constant 0 : i32
    %c0_i32_0 = arith.constant 0 : i32
    return %arg0, %c0_i32, %arg1 : i32, i32, i32
  }
}

</mosaic_0001>

<llo_original>
// kernel: fused_forward.2
$region0: #{fused_forward.2}
  #allocation0 [shape = 'u32[]', space=smem, size = 0x4, offset = 0x4, fixed_abs, tag = 'smem constant byte address 0x4 - core index']
  #allocation1 [shape = 'u32[72,128]{1,0:T(1,128)}', space=vmem, size = 0x9000, scoped, tag = 'internal scratch']
  %s0 = inlined_call_operand.vmem [shape: f32[2,40,1024], index: 0, kind: input, shape index: {}]
  %s1 = inlined_call_operand.vmem [shape: f32[2,40,40], index: 1, kind: output, shape index: {0}]
  %s2 = inlined_call_operand.vmem [shape: f32[2,40,128], index: 2, kind: output, shape index: {1}]
  %3 = xla_tuple %s1, %s2
  %s4 = sld [smem:[#allocation0]]
  $region72: #{fused_forward.2} parent=0
    _
  %s6 = ssub.s32 1, %s4
  %s7 = scalar_select 0, %s6, %s4
  $region1: #{fused_forward.2} parent=0
    #allocation2 [shape = 'u8[81920]{0}', space=vmem, size = 0x14000, scoped, tag = 'input window, operand 0']
    loop: start=0, step=1, limit=10
    $region2: #{fused_forward.2} parent=1 // loop_pre_header
      _
    $region3: #{fused_forward.2} parent=1 // loop_header
      %s9 = sphi 0, %s13
      %p10 = scmp.ge.s32.totalorder %s9, 10
      %s16 = sphi 0, %s28
      %s17 = sphi 0, %s24
      %s18 = sphi 0, %s16
      %s19 = sphi 0, %s17
      %s20 = sphi 0, %s18
      %s21 = sphi 0, %s19
      %s33 = sphi 0, %s35
      %s36 = sphi 0, %s33
      %s37 = sphi 0, %s36
      %s53 = sphi 0, %s37
      %s59 = sphi 0, %s61
      %s62 = sphi 0, %s59
      %s63 = sphi 0, %s62
      %s79 = sphi 0, %s63
      %s85 = sphi 0, %s87
      %s88 = sphi 0, %s85
      %s89 = sphi 0, %s88
      %s105 = sphi 0, %s89
    $region4: #{fused_forward.2} parent=1 // loop_header_branch
      %12 = sbr.rel (%p10) target = $region8
    $region5: #{fused_forward.2} parent=1 // loop_body
      %s14 = ssub.s32 %s9, 1
      %s15 = ssub.s32 %s9, 2
      %s22 = sadd.s32 1, %s17
      %p23 = scmp.ge.s32.totalorder %s22, 4
      %s24 = scalar_select %p23, 0, %s22
      %s25 = sadd.s32 1, %s16
      %s26 = scalar_select %p23, %s25, %s16
      %p27 = scmp.ge.s32.totalorder %s26, 2
      %s28 = scalar_select %p27, 0, %s26
      %s29 = ssub.s32 %s16, %s28
      %s30 = ssub.s32 %s17, %s24
      %s31 = sor.u32 %s29, %s30
      %p32 = scmp.eq.s32.totalorder %s31, 0
      %s34 = sadd.s32 %s33, 1
      %s35 = scalar_select %p32, %s33, %s34
      %p38 = pneg %p32
      %p39 = scmp.eq.s32.totalorder %s9, 7
      %p40 = por %p38, %p39
      %p41 = scmp.ne.s32.totalorder %s33, %s36
      %p42 = scmp.eq.s32.totalorder %s9, 0
      %p43 = por %p41, %p42
      %p44 = scmp.ne.s32.totalorder %s33, %s36
      %p45 = scmp.eq.s32.totalorder %s14, 7
      %p46 = por %p44, %p45
      %p47 = scmp.ne.s32.totalorder %s36, %s37
      %p48 = scmp.eq.s32.totalorder %s14, 0
      %p49 = por %p47, %p48
      %p50 = scmp.ne.s32.totalorder %s36, %s37
      %p51 = scmp.eq.s32.totalorder %s15, 7
      %p52 = por %p50, %p51
      %p54 = scmp.ne.s32.totalorder %s37, %s53
      %p55 = scmp.eq.s32.totalorder %s15, 0
      %p56 = por %p54, %p55
      %s57 = ssub.s32 %s16, %s28
      %p58 = scmp.eq.s32.totalorder %s57, 0
      %s60 = sadd.s32 %s59, 1
      %s61 = scalar_select %p58, %s59, %s60
      %p64 = pneg %p58
      %p65 = scmp.eq.s32.totalorder %s9, 7
      %p66 = por %p64, %p65
      %p67 = scmp.ne.s32.totalorder %s59, %s62
      %p68 = scmp.eq.s32.totalorder %s9, 0
      %p69 = por %p67, %p68
      %p70 = scmp.ne.s32.totalorder %s59, %s62
      %p71 = scmp.eq.s32.totalorder %s14, 7
      %p72 = por %p70, %p71
      %p73 = scmp.ne.s32.totalorder %s62, %s63
      %p74 = scmp.eq.s32.totalorder %s14, 0
      %p75 = por %p73, %p74
      %p76 = scmp.ne.s32.totalorder %s62, %s63
      %p77 = scmp.eq.s32.totalorder %s15, 7
      %p78 = por %p76, %p77
      %p80 = scmp.ne.s32.totalorder %s63, %s79
      %p81 = scmp.eq.s32.totalorder %s15, 0
      %p82 = por %p80, %p81
      %s83 = ssub.s32 %s16, %s28
      %p84 = scmp.eq.s32.totalorder %s83, 0
      %s86 = sadd.s32 %s85, 1
      %s87 = scalar_select %p84, %s85, %s86
      %p90 = pneg %p84
      %p91 = scmp.eq.s32.totalorder %s9, 7
      %p92 = por %p90, %p91
      %p93 = scmp.ne.s32.totalorder %s85, %s88
      %p94 = scmp.eq.s32.totalorder %s9, 0
      %p95 = por %p93, %p94
      %p96 = scmp.ne.s32.totalorder %s85, %s88
      %p97 = scmp.eq.s32.totalorder %s14, 7
      %p98 = por %p96, %p97
      %p99 = scmp.ne.s32.totalorder %s88, %s89
      %p100 = scmp.eq.s32.totalorder %s14, 0
      %p101 = por %p99, %p100
      %p102 = scmp.ne.s32.totalorder %s88, %s89
      %p103 = scmp.eq.s32.totalorder %s15, 7
      %p104 = por %p102, %p103
      %p106 = scmp.ne.s32.totalorder %s89, %s105
      %p107 = scmp.eq.s32.totalorder %s15, 0
      %p108 = por %p106, %p107
      %p109 = scmp.le.s32.totalorder 1, %s9
      %p110 = scmp.lt.s32.totalorder %s9, 9
      %p111 = pnand %p109, %p110
      %p112 = pneg %p111
      // Predicated region
      $region9: #{fused_forward.2} parent=5 // pred_check
        _
      $region10: #{fused_forward.2} parent=5 // pred_check_branch
        %114 = sbr.rel (%p111) target = $region12
      $region11: #{fused_forward.2} parent=5 // pred_region
        %s115 = ssub.s32 %s9, 1
      $region12: #{fused_forward.2} parent=5 // pred_fallthru
        _
      %p116 = scmp.lt.s32.totalorder %s9, 8
      // Predicated region
      $region13: #{fused_forward.2} parent=5 // pred_check
        %p117 = pneg %p116
      $region14: #{fused_forward.2} parent=5 // pred_check_branch
        %119 = sbr.rel (%p117) target = $region16
      $region15: #{fused_forward.2} parent=5 // pred_region
        // Predicated region
        $region17: #{fused_forward.2} parent=15 // pred_check
          %p120 = pneg %p43
        $region18: #{fused_forward.2} parent=15 // pred_check_branch
          %122 = sbr.rel (%p120) target = $region20
        $region19: #{fused_forward.2} parent=15 // pred_region
          %s123 = sand.u32 %s33, 1
          %s124 = sand.u32 %s33, 1
          %s125 = smul.addr %s124, 80
          %s126 = scalar_lea.vmem [#allocation2], %s125
          %s127 = smul.u32 2, %s17
          %s128 = smul.addr %s16, 40
          %s129 = sadd.s32 %s127, %s128
          %s130 = smul.addr %s129, 8
          %s131 = scalar_lea.vmem %s0, %s130
          // Predicated region
          $region21: #{fused_forward.2} parent=19 // pred_check
            _
          $region22: #{fused_forward.2} parent=19 // pred_check_branch
            %133 = sbr.rel (0) target = $region24
          $region23: #{fused_forward.2} parent=19 // pred_region
            // Predicated region
            $region25: #{fused_forward.2} parent=23 // pred_check
              _
            $region26: #{fused_forward.2} parent=23 // pred_check_branch
              %135 = sbr.rel (0) target = $region28
            $region27: #{fused_forward.2} parent=23 // pred_region
              loop: start=0, step=1, limit=1
              $region29: #{fused_forward.2} parent=27 // loop_pre_header
                _
              $region30: #{fused_forward.2} parent=27 // loop_header
                %s137 = sphi 0, %s141
                %p138 = scmp.ge.s32.totalorder %s137, 1
                %s142 = sphi %s131, %s131
                %s143 = sphi %s126, %s126
              $region31: #{fused_forward.2} parent=27 // loop_header_branch
                %140 = sbr.rel (%p138) target = $region35
              $region32: #{fused_forward.2} parent=27 // loop_body
                %v144 = vld [vmem:[%s142] sm:$0xff]
                %145 = vst [vmem:[%s143] sm:$0xff] %v144
                %v146 = vld [vmem:[%s142 + $0x8] sm:$0xff]
                %147 = vst [vmem:[%s143 + $0x8] sm:$0xff] %v146
                %v148 = vld [vmem:[%s142 + $0x40] sm:$0xff]
                %149 = vst [vmem:[%s143 + $0x10] sm:$0xff] %v148
                %v150 = vld [vmem:[%s142 + $0x48] sm:$0xff]
                %151 = vst [vmem:[%s143 + $0x18] sm:$0xff] %v150
                %v152 = vld [vmem:[%s142 + $0x80] sm:$0xff]
                %153 = vst [vmem:[%s143 + $0x20] sm:$0xff] %v152
                %v154 = vld [vmem:[%s142 + $0x88] sm:$0xff]
                %155 = vst [vmem:[%s143 + $0x28] sm:$0xff] %v154
                %v156 = vld [vmem:[%s142 + $0xc0] sm:$0xff]
                %157 = vst [vmem:[%s143 + $0x30] sm:$0xff] %v156
                %v158 = vld [vmem:[%s142 + $0xc8] sm:$0xff]
                %159 = vst [vmem:[%s143 + $0x38] sm:$0xff] %v158
                %v160 = vld [vmem:[%s142 + $0x100] sm:$0xff]
                %161 = vst [vmem:[%s143 + $0x40] sm:$0xff] %v160
                %v162 = vld [vmem:[%s142 + $0x108] sm:$0xff]
                %163 = vst [vmem:[%s143 + $0x48] sm:$0xff] %v162
              $region33: #{fused_forward.2} parent=27 // loop_footer
                %s141 = sadd.s32 1, %s137
              $region34: #{fused_forward.2} parent=27 // loop_footer_branch
                %136 = sbr.rel target = $region30
              $region35: #{fused_forward.2} parent=27 // loop_exit
                _
            $region28: #{fused_forward.2} parent=23 // pred_fallthru
              _
            // Predicated region
            $region36: #{fused_forward.2} parent=23 // pred_check
              _
            $region37: #{fused_forward.2} parent=23 // pred_check_branch
              %165 = sbr.rel target = $region39
            $region38: #{fused_forward.2} parent=23 // pred_region
              _
            $region39: #{fused_forward.2} parent=23 // pred_fallthru
              _
          $region24: #{fused_forward.2} parent=19 // pred_fallthru
            _
          %166 = vnop
        $region20: #{fused_forward.2} parent=15 // pred_fallthru
          _
      $region16: #{fused_forward.2} parent=5 // pred_fallthru
        _
      %p167 = scmp.le.s32.totalorder 1, %s9
      %p168 = scmp.lt.s32.totalorder %s9, 9
      %p169 = pnand %p167, %p168
      %p170 = pneg %p169
      // Predicated region
      $region40: #{fused_forward.2} parent=5 // pred_check
        _
      $region41: #{fused_forward.2} parent=5 // pred_check_branch
        %172 = sbr.rel (%p169) target = $region43
      $region42: #{fused_forward.2} parent=5 // pred_region
        %s173 = ssub.s32 %s9, 1
        %s174 = sand.u32 %s36, 1
        %s175 = sand.u32 %s36, 1
        %s176 = smul.addr %s175, 80
        %s177 = scalar_lea.vmem [#allocation2], %s176
        // Predicated region
        $region44: #{fused_forward.2} parent=42 // pred_check
          %p178 = pneg %p49
        $region45: #{fused_forward.2} parent=42 // pred_check_branch
          %180 = sbr.rel (%p178) target = $region47
        $region46: #{fused_forward.2} parent=42 // pred_region
          _
        $region47: #{fused_forward.2} parent=42 // pred_fallthru
          _
        %s181 = sand.u32 %s36, 1
        %s182 = sand.u32 %s36, 1
        %s183 = smul.addr %s182, 80
        %s184 = scalar_lea.vmem [#allocation2], %s183
        %p185 = pneg %p49
        %p186 = pneg %p46
        %p187 = pneg %p75
        %p188 = pneg %p72
        %p189 = scmp.lt.s32.totalorder %s18, 1
        %s190 = scalar_select %p189, %s18, 1
        %s191 = smul.addr %s190, 5
        %s192 = smul.addr %s191, 8
        %s193 = scalar_lea.vmem %s1, %s192
        %p194 = pneg %p101
        %p195 = pneg %p98
        %p196 = scmp.lt.s32.totalorder %s18, 1
        %s197 = scalar_select %p196, %s18, 1
        %s198 = smul.addr %s197, 5
        %s199 = smul.addr %s198, 8
        %s200 = scalar_lea.vmem %s2, %s199
        %s201 = smul.u32 2, %s19
        %p202 = scmp.lt.s32.totalorder %s18, 1
        %s203 = scalar_select %p202, %s18, 1
        %s204 = smul.addr %s203, 5
        %s205 = smul.addr %s204, 8
        %s206 = scalar_lea.vmem %s1, %s205
        %p207 = scmp.lt.s32.totalorder %s18, 1
        %s208 = scalar_select %p207, %s18, 1
        %s209 = smul.addr %s208, 5
        %s210 = smul.addr %s209, 8
        %s211 = scalar_lea.vmem %s2, %s210
        %p212 = scmp.eq.s32.totalorder %s19, 0
        // Predicated region
        $region48: #{fused_forward.2} parent=42 // pred_check
          %p213 = pneg %p212
        $region49: #{fused_forward.2} parent=42 // pred_check_branch
          %215 = sbr.rel (%p213) target = $region51
        $region50: #{fused_forward.2} parent=42 // pred_region
          %vm216 = vcmask 326656
          %217 = vst.msk [vmem:[%s206] sm:$0xff] %vm216, 0.0
          %218 = vst.msk [vmem:[%s206 + $0x8] sm:$0xff] %vm216, 0.0
          %219 = vst.msk [vmem:[%s206 + $0x10] sm:$0xff] %vm216, 0.0
          %220 = vst.msk [vmem:[%s206 + $0x18] sm:$0xff] %vm216, 0.0
          %221 = vst.msk [vmem:[%s206 + $0x20] sm:$0xff] %vm216, 0.0
          %222 = vst [vmem:[%s211] sm:$0xff] 0.0
          %223 = vst [vmem:[%s211 + $0x8] sm:$0xff] 0.0
          %224 = vst [vmem:[%s211 + $0x10] sm:$0xff] 0.0
          %225 = vst [vmem:[%s211 + $0x18] sm:$0xff] 0.0
          %226 = vst [vmem:[%s211 + $0x20] sm:$0xff] 0.0
        $region51: #{fused_forward.2} parent=42 // pred_fallthru
          _
        %v227 = vld [vmem:[%s177] sm:$0xff]
        %v228 = vld [vmem:[%s177 + $0x8] sm:$0xff]
        %v229 = vld [vmem:[%s177 + $0x10] sm:$0xff]
        %v230 = vld [vmem:[%s177 + $0x18] sm:$0xff]
        %v231 = vld [vmem:[%s177 + $0x20] sm:$0xff]
        %v232 = vld [vmem:[%s177 + $0x28] sm:$0xff]
        %v233 = vld [vmem:[%s177 + $0x30] sm:$0xff]
        %v234 = vld [vmem:[%s177 + $0x38] sm:$0xff]
        %v235 = vld [vmem:[%s177 + $0x40] sm:$0xff]
        %v236 = vld [vmem:[%s177 + $0x48] sm:$0xff]
        %v237 = vld [vmem:[%s206] sm:$0xff]
        %v238 = vld [vmem:[%s206 + $0x8] sm:$0xff]
        %v239 = vld [vmem:[%s206 + $0x10] sm:$0xff]
        %v240 = vld [vmem:[%s206 + $0x18] sm:$0xff]
        %v241 = vld [vmem:[%s206 + $0x20] sm:$0xff]
        %242 = vmatpush.xpose.msra.mxu0 0.0
        %243 = vmatpush.xpose.msra.mxu0 0.0
        %244 = vmatpush.xpose.msra.mxu0 0.0
        %245 = vmatpush.xpose.msra.mxu0 0.0
        %246 = vmatpush.xpose.msra.mxu0 0.0
        %247 = vmatpush.xpose.msra.mxu0 0.0
        %248 = vmatpush.xpose.msra.mxu0 0.0
        %249 = vmatpush.xpose.msra.mxu0 0.0
        %250 = vmatpush.xpose.msra.mxu0 0.0
        %251 = vmatpush.xpose.msra.mxu0 0.0
        %252 = vmatpush.xpose.msra.mxu0 0.0
        %253 = vmatpush.xpose.msra.mxu0 %v235
        %254 = vmatpush.xpose.msra.mxu0 %v233
        %255 = vmatpush.xpose.msra.mxu0 %v231
        %256 = vmatpush.xpose.msra.mxu0 %v229
        %257 = vmatpush.xpose.msra.mxu0 %v227
        %258 = vmatmul.f32.gmra.mxu0 %v227
        %v259 = vpop.f32.mrf.mxu0
        %v260 = vadd.f32 0.0, %v259
        %261 = vmatmul.f32.gmra.mxu0 %v229
        %v262 = vpop.f32.mrf.mxu0
        %v263 = vadd.f32 0.0, %v262
        %264 = vmatmul.f32.gmra.mxu0 %v231
        %v265 = vpop.f32.mrf.mxu0
        %v266 = vadd.f32 0.0, %v265
        %267 = vmatmul.f32.gmra.mxu0 %v233
        %v268 = vpop.f32.mrf.mxu0
        %v269 = vadd.f32 0.0, %v268
        %270 = vmatmul.f32.gmra.mxu0 %v235
        %v271 = vpop.f32.mrf.mxu0
        %v272 = vadd.f32 0.0, %v271
        %273 = vdwg.mxu0
        %274 = vmatpush.xpose.msra.mxu0 0.0
        %275 = vmatpush.xpose.msra.mxu0 0.0
        %276 = vmatpush.xpose.msra.mxu0 0.0
        %277 = vmatpush.xpose.msra.mxu0 0.0
        %278 = vmatpush.xpose.msra.mxu0 0.0
        %279 = vmatpush.xpose.msra.mxu0 0.0
        %280 = vmatpush.xpose.msra.mxu0 0.0
        %281 = vmatpush.xpose.msra.mxu0 0.0
        %282 = vmatpush.xpose.msra.mxu0 0.0
        %283 = vmatpush.xpose.msra.mxu0 0.0
        %284 = vmatpush.xpose.msra.mxu0 0.0
        %285 = vmatpush.xpose.msra.mxu0 %v236
        %286 = vmatpush.xpose.msra.mxu0 %v234
        %287 = vmatpush.xpose.msra.mxu0 %v232
        %288 = vmatpush.xpose.msra.mxu0 %v230
        %289 = vmatpush.xpose.msra.mxu0 %v228
        %290 = vmatmul.f32.gmra.mxu0 %v228
        %v291 = vpop.f32.mrf.mxu0
        %v292 = vadd.f32 %v260, %v291
        %293 = vmatmul.f32.gmra.mxu0 %v230
        %v294 = vpop.f32.mrf.mxu0
        %v295 = vadd.f32 %v263, %v294
        %296 = vmatmul.f32.gmra.mxu0 %v232
        %v297 = vpop.f32.mrf.mxu0
        %v298 = vadd.f32 %v266, %v297
        %299 = vmatmul.f32.gmra.mxu0 %v234
        %v300 = vpop.f32.mrf.mxu0
        %v301 = vadd.f32 %v269, %v300
        %302 = vmatmul.f32.gmra.mxu0 %v236
        %v303 = vpop.f32.mrf.mxu0
        %v304 = vadd.f32 %v272, %v303
        %305 = vdwg.mxu0
        %v306 = vadd.f32 %v237, %v292
        %v307 = vadd.f32 %v238, %v295
        %v308 = vadd.f32 %v239, %v298
        %v309 = vadd.f32 %v240, %v301
        %v310 = vadd.f32 %v241, %v304
        %vm311 = vcmask 326656
        %312 = vst.msk [vmem:[%s206] sm:$0xff] %vm311, %v306
        %313 = vst.msk [vmem:[%s206 + $0x8] sm:$0xff] %vm311, %v307
        %314 = vst.msk [vmem:[%s206 + $0x10] sm:$0xff] %vm311, %v308
        %315 = vst.msk [vmem:[%s206 + $0x18] sm:$0xff] %vm311, %v309
        %316 = vst.msk [vmem:[%s206 + $0x20] sm:$0xff] %vm311, %v310
        %v317 = vadd.f32 %v227, %v228
        %v318 = vadd.f32 %v229, %v230
        %v319 = vadd.f32 %v231, %v232
        %v320 = vadd.f32 %v233, %v234
        %v321 = vadd.f32 %v235, %v236
        %v322 = vld [vmem:[%s211] sm:$0xff]
        %v323 = vld [vmem:[%s211 + $0x8] sm:$0xff]
        %v324 = vld [vmem:[%s211 + $0x10] sm:$0xff]
        %v325 = vld [vmem:[%s211 + $0x18] sm:$0xff]
        %v326 = vld [vmem:[%s211 + $0x20] sm:$0xff]
        %v327 = vadd.f32 %v322, %v317
        %v328 = vadd.f32 %v323, %v318
        %v329 = vadd.f32 %v324, %v319
        %v330 = vadd.f32 %v325, %v320
        %v331 = vadd.f32 %v326, %v321
        %332 = vst [vmem:[%s211] sm:$0xff] %v327
        %333 = vst [vmem:[%s211 + $0x8] sm:$0xff] %v328
        %334 = vst [vmem:[%s211 + $0x10] sm:$0xff] %v329
        %335 = vst [vmem:[%s211 + $0x18] sm:$0xff] %v330
        %336 = vst [vmem:[%s211 + $0x20] sm:$0xff] %v331
        %p337 = scmp.lt.s32.totalorder %s18, 1
        %s338 = scalar_select %p337, %s18, 1
        %s339 = smul.addr %s338, 5
        %s340 = smul.addr %s339, 8
        %s341 = scalar_lea.vmem %s1, %s340
        %p342 = scmp.lt.s32.totalorder %s18, 1
        %s343 = scalar_select %p342, %s18, 1
        %s344 = smul.addr %s343, 5
        %s345 = smul.addr %s344, 8
        %s346 = scalar_lea.vmem %s2, %s345
        // Predicated region
        $region52: #{fused_forward.2} parent=42 // pred_check
          %p347 = pneg %p72
        $region53: #{fused_forward.2} parent=42 // pred_check_branch
          %349 = sbr.rel (%p347) target = $region55
        $region54: #{fused_forward.2} parent=42 // pred_region
          _
        $region55: #{fused_forward.2} parent=42 // pred_fallthru
          _
        // Predicated region
        $region56: #{fused_forward.2} parent=42 // pred_check
          %p350 = pneg %p98
        $region57: #{fused_forward.2} parent=42 // pred_check_branch
          %352 = sbr.rel (%p350) target = $region59
        $region58: #{fused_forward.2} parent=42 // pred_region
          _
        $region59: #{fused_forward.2} parent=42 // pred_fallthru
          _
      $region43: #{fused_forward.2} parent=5 // pred_fallthru
        _
      %p353 = scmp.le.s32.totalorder 2, %s9
      // Predicated region
      $region60: #{fused_forward.2} parent=5 // pred_check
        %p354 = pneg %p353
      $region61: #{fused_forward.2} parent=5 // pred_check_branch
        %356 = sbr.rel (%p354) target = $region63
      $region62: #{fused_forward.2} parent=5 // pred_region
        %s357 = ssub.s32 %s9, 2
        // Predicated region
        $region64: #{fused_forward.2} parent=62 // pred_check
          %p358 = pneg %p78
        $region65: #{fused_forward.2} parent=62 // pred_check_branch
          %360 = sbr.rel (%p358) target = $region67
        $region66: #{fused_forward.2} parent=62 // pred_region
          %p361 = scmp.lt.s32.totalorder %s20, 1
          %s362 = scalar_select %p361, %s20, 1
          %s363 = smul.addr %s362, 5
          %s364 = smul.addr %s363, 8
          %s365 = scalar_lea.vmem %s1, %s364
        $region67: #{fused_forward.2} parent=62 // pred_fallthru
          _
        // Predicated region
        $region68: #{fused_forward.2} parent=62 // pred_check
          %p366 = pneg %p104
        $region69: #{fused_forward.2} parent=62 // pred_check_branch
          %368 = sbr.rel (%p366) target = $region71
        $region70: #{fused_forward.2} parent=62 // pred_region
          %p369 = scmp.lt.s32.totalorder %s20, 1
          %s370 = scalar_select %p369, %s20, 1
          %s371 = smul.addr %s370, 5
          %s372 = smul.addr %s371, 8
          %s373 = scalar_lea.vmem %s2, %s372
        $region71: #{fused_forward.2} parent=62 // pred_fallthru
          _
      $region63: #{fused_forward.2} parent=5 // pred_fallthru
        _
    $region6: #{fused_forward.2} parent=1 // loop_footer
      %s13 = sadd.s32 1, %s9
    $region7: #{fused_forward.2} parent=1 // loop_footer_branch
      %8 = sbr.rel target = $region3
    $region8: #{fused_forward.2} parent=1 // loop_exit
      _

// kernel: fused_forward.3
$region0: #{fused_forward.3}
  #allocation0 [shape = 'u32[]', space=smem, size = 0x4, offset = 0x4, fixed_abs, tag = 'smem constant byte address 0x4 - core index']
  #allocation1 [shape = 'u32[72,128]{1,0:T(1,128)}', space=vmem, size = 0x9000, scoped, tag = 'internal scratch']
  %s0 = inlined_call_operand.vmem [shape: f32[2,24,40], index: 0, kind: input, shape index: {}]
  %s1 = inlined_call_operand.vmem [shape: f32[24,1], index: 1, kind: input, shape index: {}]
  %s2 = inlined_call_operand.vmem [shape: f32[2,40,1024], index: 2, kind: input, shape index: {}]
  %s3 = inlined_call_operand.vmem [shape: f32[2,24,1024], index: 3, kind: input, shape index: {}]
  %s4 = inlined_call_operand.vmem [shape: f32[2,24,1024], index: 4, kind: output, shape index: {}]
  %s5 = sld [smem:[#allocation0]]
  $region114: #{fused_forward.3} parent=0
    _
  %s7 = ssub.s32 1, %s5
  %s8 = scalar_select 0, %s7, %s5
  $region1: #{fused_forward.3} parent=0
    #allocation2 [shape = 'u8[81920]{0}', space=vmem, size = 0x14000, scoped, tag = 'input window, operand 2']
    #allocation3 [shape = 'u8[49152]{0}', space=vmem, size = 0xc000, scoped, tag = 'input window, operand 3']
    #allocation4 [shape = 'u8[49152]{0}', space=vmem, size = 0xc000, scoped, tag = 'output window, operand 0']
    loop: start=0, step=1, limit=10
    $region2: #{fused_forward.3} parent=1 // loop_pre_header
      _
    $region3: #{fused_forward.3} parent=1 // loop_header
      %s10 = sphi 0, %s14
      %p11 = scmp.ge.s32.totalorder %s10, 10
      %s17 = sphi 0, %s29
      %s18 = sphi 0, %s25
      %s19 = sphi 0, %s17
      %s20 = sphi 0, %s18
      %s21 = sphi 0, %s19
      %s22 = sphi 0, %s20
      %s32 = sphi 0, %s34
      %s35 = sphi 0, %s32
      %s36 = sphi 0, %s35
      %s52 = sphi 0, %s36
      %s56 = sphi 0, %s56
      %s58 = sphi 0, %s56
      %s59 = sphi 0, %s58
      %s73 = sphi 0, %s59
      %s81 = sphi 0, %s83
      %s84 = sphi 0, %s81
      %s85 = sphi 0, %s84
      %s101 = sphi 0, %s85
      %s109 = sphi 0, %s111
      %s112 = sphi 0, %s109
      %s113 = sphi 0, %s112
      %s129 = sphi 0, %s113
      %s137 = sphi 0, %s139
      %s140 = sphi 0, %s137
      %s141 = sphi 0, %s140
      %s157 = sphi 0, %s141
    $region4: #{fused_forward.3} parent=1 // loop_header_branch
      %13 = sbr.rel (%p11) target = $region8
    $region5: #{fused_forward.3} parent=1 // loop_body
      %s15 = ssub.s32 %s10, 1
      %s16 = ssub.s32 %s10, 2
      %s23 = sadd.s32 1, %s18
      %p24 = scmp.ge.s32.totalorder %s23, 4
      %s25 = scalar_select %p24, 0, %s23
      %s26 = sadd.s32 1, %s17
      %s27 = scalar_select %p24, %s26, %s17
      %p28 = scmp.ge.s32.totalorder %s27, 2
      %s29 = scalar_select %p28, 0, %s27
      %s30 = ssub.s32 %s17, %s29
      %p31 = scmp.eq.s32.totalorder %s30, 0
      %s33 = sadd.s32 %s32, 1
      %s34 = scalar_select %p31, %s32, %s33
      %p37 = pneg %p31
      %p38 = scmp.eq.s32.totalorder %s10, 7
      %p39 = por %p37, %p38
      %p40 = scmp.ne.s32.totalorder %s32, %s35
      %p41 = scmp.eq.s32.totalorder %s10, 0
      %p42 = por %p40, %p41
      %p43 = scmp.ne.s32.totalorder %s32, %s35
      %p44 = scmp.eq.s32.totalorder %s15, 7
      %p45 = por %p43, %p44
      %p46 = scmp.ne.s32.totalorder %s35, %s36
      %p47 = scmp.eq.s32.totalorder %s15, 0
      %p48 = por %p46, %p47
      %p49 = scmp.ne.s32.totalorder %s35, %s36
      %p50 = scmp.eq.s32.totalorder %s16, 7
      %p51 = por %p49, %p50
      %p53 = scmp.ne.s32.totalorder %s36, %s52
      %p54 = scmp.eq.s32.totalorder %s16, 0
      %p55 = por %p53, %p54
      %s57 = sadd.s32 %s56, 1
      %p60 = scmp.eq.s32.totalorder %s10, 7
      %p61 = scmp.ne.s32.totalorder %s56, %s58
      %p62 = scmp.eq.s32.totalorder %s10, 0
      %p63 = por %p61, %p62
      %p64 = scmp.ne.s32.totalorder %s56, %s58
      %p65 = scmp.eq.s32.totalorder %s15, 7
      %p66 = por %p64, %p65
      %p67 = scmp.ne.s32.totalorder %s58, %s59
      %p68 = scmp.eq.s32.totalorder %s15, 0
      %p69 = por %p67, %p68
      %p70 = scmp.ne.s32.totalorder %s58, %s59
      %p71 = scmp.eq.s32.totalorder %s16, 7
      %p72 = por %p70, %p71
      %p74 = scmp.ne.s32.totalorder %s59, %s73
      %p75 = scmp.eq.s32.totalorder %s16, 0
      %p76 = por %p74, %p75
      %s77 = ssub.s32 %s17, %s29
      %s78 = ssub.s32 %s18, %s25
      %s79 = sor.u32 %s77, %s78
      %p80 = scmp.eq.s32.totalorder %s79, 0
      %s82 = sadd.s32 %s81, 1
      %s83 = scalar_select %p80, %s81, %s82
      %p86 = pneg %p80
      %p87 = scmp.eq.s32.totalorder %s10, 7
      %p88 = por %p86, %p87
      %p89 = scmp.ne.s32.totalorder %s81, %s84
      %p90 = scmp.eq.s32.totalorder %s10, 0
      %p91 = por %p89, %p90
      %p92 = scmp.ne.s32.totalorder %s81, %s84
      %p93 = scmp.eq.s32.totalorder %s15, 7
      %p94 = por %p92, %p93
      %p95 = scmp.ne.s32.totalorder %s84, %s85
      %p96 = scmp.eq.s32.totalorder %s15, 0
      %p97 = por %p95, %p96
      %p98 = scmp.ne.s32.totalorder %s84, %s85
      %p99 = scmp.eq.s32.totalorder %s16, 7
      %p100 = por %p98, %p99
      %p102 = scmp.ne.s32.totalorder %s85, %s101
      %p103 = scmp.eq.s32.totalorder %s16, 0
      %p104 = por %p102, %p103
      %s105 = ssub.s32 %s17, %s29
      %s106 = ssub.s32 %s18, %s25
      %s107 = sor.u32 %s105, %s106
      %p108 = scmp.eq.s32.totalorder %s107, 0
      %s110 = sadd.s32 %s109, 1
      %s111 = scalar_select %p108, %s109, %s110
      %p114 = pneg %p108
      %p115 = scmp.eq.s32.totalorder %s10, 7
      %p116 = por %p114, %p115
      %p117 = scmp.ne.s32.totalorder %s109, %s112
      %p118 = scmp.eq.s32.totalorder %s10, 0
      %p119 = por %p117, %p118
      %p120 = scmp.ne.s32.totalorder %s109, %s112
      %p121 = scmp.eq.s32.totalorder %s15, 7
      %p122 = por %p120, %p121
      %p123 = scmp.ne.s32.totalorder %s112, %s113
      %p124 = scmp.eq.s32.totalorder %s15, 0
      %p125 = por %p123, %p124
      %p126 = scmp.ne.s32.totalorder %s112, %s113
      %p127 = scmp.eq.s32.totalorder %s16, 7
      %p128 = por %p126, %p127
      %p130 = scmp.ne.s32.totalorder %s113, %s129
      %p131 = scmp.eq.s32.totalorder %s16, 0
      %p132 = por %p130, %p131
      %s133 = ssub.s32 %s17, %s29
      %s134 = ssub.s32 %s18, %s25
      %s135 = sor.u32 %s133, %s134
      %p136 = scmp.eq.s32.totalorder %s135, 0
      %s138 = sadd.s32 %s137, 1
      %s139 = scalar_select %p136, %s137, %s138
      %p142 = pneg %p136
      %p143 = scmp.eq.s32.totalorder %s10, 7
      %p144 = por %p142, %p143
      %p145 = scmp.ne.s32.totalorder %s137, %s140
      %p146 = scmp.eq.s32.totalorder %s10, 0
      %p147 = por %p145, %p146
      %p148 = scmp.ne.s32.totalorder %s137, %s140
      %p149 = scmp.eq.s32.totalorder %s15, 7
      %p150 = por %p148, %p149
      %p151 = scmp.ne.s32.totalorder %s140, %s141
      %p152 = scmp.eq.s32.totalorder %s15, 0
      %p153 = por %p151, %p152
      %p154 = scmp.ne.s32.totalorder %s140, %s141
      %p155 = scmp.eq.s32.totalorder %s16, 7
      %p156 = por %p154, %p155
      %p158 = scmp.ne.s32.totalorder %s141, %s157
      %p159 = scmp.eq.s32.totalorder %s16, 0
      %p160 = por %p158, %p159
      %p161 = scmp.le.s32.totalorder 1, %s10
      %p162 = scmp.lt.s32.totalorder %s10, 9
      %p163 = pnand %p161, %p162
      %p164 = pneg %p163
      // Predicated region
      $region9: #{fused_forward.3} parent=5 // pred_check
        _
      $region10: #{fused_forward.3} parent=5 // pred_check_branch
        %166 = sbr.rel (%p163) target = $region12
      $region11: #{fused_forward.3} parent=5 // pred_region
        %s167 = ssub.s32 %s10, 1
        // Predicated region
        $region13: #{fused_forward.3} parent=11 // pred_check
          %p168 = pneg %p69
        $region14: #{fused_forward.3} parent=11 // pred_check_branch
          %170 = sbr.rel (%p168) target = $region16
        $region15: #{fused_forward.3} parent=11 // pred_region
          _
        $region16: #{fused_forward.3} parent=11 // pred_fallthru
          _
      $region12: #{fused_forward.3} parent=5 // pred_fallthru
        _
      %p171 = scmp.lt.s32.totalorder %s10, 8
      // Predicated region
      $region17: #{fused_forward.3} parent=5 // pred_check
        %p172 = pneg %p171
      $region18: #{fused_forward.3} parent=5 // pred_check_branch
        %174 = sbr.rel (%p172) target = $region20
      $region19: #{fused_forward.3} parent=5 // pred_region
        // Predicated region
        $region21: #{fused_forward.3} parent=19 // pred_check
          %p175 = pneg %p42
        $region22: #{fused_forward.3} parent=19 // pred_check_branch
          %177 = sbr.rel (%p175) target = $region24
        $region23: #{fused_forward.3} parent=19 // pred_region
          %p178 = scmp.lt.s32.totalorder %s17, 1
          %s179 = scalar_select %p178, %s17, 1
          %s180 = smul.addr %s179, 3
          %s181 = smul.addr %s180, 8
          %s182 = scalar_lea.vmem %s0, %s181
        $region24: #{fused_forward.3} parent=19 // pred_fallthru
          _
        // Predicated region
        $region25: #{fused_forward.3} parent=19 // pred_check
          %p183 = pneg %p91
        $region26: #{fused_forward.3} parent=19 // pred_check_branch
          %185 = sbr.rel (%p183) target = $region28
        $region27: #{fused_forward.3} parent=19 // pred_region
          %s186 = sand.u32 %s81, 1
          %s187 = sand.u32 %s81, 1
          %s188 = smul.addr %s187, 80
          %s189 = scalar_lea.vmem [#allocation2], %s188
          %s190 = smul.u32 2, %s18
          %s191 = smul.addr %s17, 40
          %s192 = sadd.s32 %s190, %s191
          %s193 = smul.addr %s192, 8
          %s194 = scalar_lea.vmem %s2, %s193
          // Predicated region
          $region29: #{fused_forward.3} parent=27 // pred_check
            _
          $region30: #{fused_forward.3} parent=27 // pred_check_branch
            %196 = sbr.rel (0) target = $region32
          $region31: #{fused_forward.3} parent=27 // pred_region
            // Predicated region
            $region33: #{fused_forward.3} parent=31 // pred_check
              _
            $region34: #{fused_forward.3} parent=31 // pred_check_branch
              %198 = sbr.rel (0) target = $region36
            $region35: #{fused_forward.3} parent=31 // pred_region
              loop: start=0, step=1, limit=1
              $region37: #{fused_forward.3} parent=35 // loop_pre_header
                _
              $region38: #{fused_forward.3} parent=35 // loop_header
                %s200 = sphi 0, %s204
                %p201 = scmp.ge.s32.totalorder %s200, 1
                %s205 = sphi %s194, %s194
                %s206 = sphi %s189, %s189
              $region39: #{fused_forward.3} parent=35 // loop_header_branch
                %203 = sbr.rel (%p201) target = $region43
              $region40: #{fused_forward.3} parent=35 // loop_body
                %v207 = vld [vmem:[%s205] sm:$0xff]
                %208 = vst [vmem:[%s206] sm:$0xff] %v207
                %v209 = vld [vmem:[%s205 + $0x8] sm:$0xff]
                %210 = vst [vmem:[%s206 + $0x8] sm:$0xff] %v209
                %v211 = vld [vmem:[%s205 + $0x40] sm:$0xff]
                %212 = vst [vmem:[%s206 + $0x10] sm:$0xff] %v211
                %v213 = vld [vmem:[%s205 + $0x48] sm:$0xff]
                %214 = vst [vmem:[%s206 + $0x18] sm:$0xff] %v213
                %v215 = vld [vmem:[%s205 + $0x80] sm:$0xff]
                %216 = vst [vmem:[%s206 + $0x20] sm:$0xff] %v215
                %v217 = vld [vmem:[%s205 + $0x88] sm:$0xff]
                %218 = vst [vmem:[%s206 + $0x28] sm:$0xff] %v217
                %v219 = vld [vmem:[%s205 + $0xc0] sm:$0xff]
                %220 = vst [vmem:[%s206 + $0x30] sm:$0xff] %v219
                %v221 = vld [vmem:[%s205 + $0xc8] sm:$0xff]
                %222 = vst [vmem:[%s206 + $0x38] sm:$0xff] %v221
                %v223 = vld [vmem:[%s205 + $0x100] sm:$0xff]
                %224 = vst [vmem:[%s206 + $0x40] sm:$0xff] %v223
                %v225 = vld [vmem:[%s205 + $0x108] sm:$0xff]
                %226 = vst [vmem:[%s206 + $0x48] sm:$0xff] %v225
              $region41: #{fused_forward.3} parent=35 // loop_footer
                %s204 = sadd.s32 1, %s200
              $region42: #{fused_forward.3} parent=35 // loop_footer_branch
                %199 = sbr.rel target = $region38
              $region43: #{fused_forward.3} parent=35 // loop_exit
                _
            $region36: #{fused_forward.3} parent=31 // pred_fallthru
              _
            // Predicated region
            $region44: #{fused_forward.3} parent=31 // pred_check
              _
            $region45: #{fused_forward.3} parent=31 // pred_check_branch
              %228 = sbr.rel target = $region47
            $region46: #{fused_forward.3} parent=31 // pred_region
              _
            $region47: #{fused_forward.3} parent=31 // pred_fallthru
              _
          $region32: #{fused_forward.3} parent=27 // pred_fallthru
            _
          %229 = vnop
        $region28: #{fused_forward.3} parent=19 // pred_fallthru
          _
        // Predicated region
        $region48: #{fused_forward.3} parent=19 // pred_check
          %p230 = pneg %p119
        $region49: #{fused_forward.3} parent=19 // pred_check_branch
          %232 = sbr.rel (%p230) target = $region51
        $region50: #{fused_forward.3} parent=19 // pred_region
          %s233 = sand.u32 %s109, 1
          %s234 = sand.u32 %s109, 1
          %s235 = smul.addr %s234, 48
          %s236 = scalar_lea.vmem [#allocation3], %s235
          %s237 = smul.u32 2, %s18
          %s238 = smul.addr %s17, 24
          %s239 = sadd.s32 %s237, %s238
          %s240 = smul.addr %s239, 8
          %s241 = scalar_lea.vmem %s3, %s240
          // Predicated region
          $region52: #{fused_forward.3} parent=50 // pred_check
            _
          $region53: #{fused_forward.3} parent=50 // pred_check_branch
            %243 = sbr.rel (0) target = $region55
          $region54: #{fused_forward.3} parent=50 // pred_region
            // Predicated region
            $region56: #{fused_forward.3} parent=54 // pred_check
              _
            $region57: #{fused_forward.3} parent=54 // pred_check_branch
              %245 = sbr.rel (0) target = $region59
            $region58: #{fused_forward.3} parent=54 // pred_region
              loop: start=0, step=1, limit=1
              $region60: #{fused_forward.3} parent=58 // loop_pre_header
                _
              $region61: #{fused_forward.3} parent=58 // loop_header
                %s247 = sphi 0, %s251
                %p248 = scmp.ge.s32.totalorder %s247, 1
                %s252 = sphi %s241, %s241
                %s253 = sphi %s236, %s236
              $region62: #{fused_forward.3} parent=58 // loop_header_branch
                %250 = sbr.rel (%p248) target = $region66
              $region63: #{fused_forward.3} parent=58 // loop_body
                %v254 = vld [vmem:[%s252] sm:$0xff]
                %255 = vst [vmem:[%s253] sm:$0xff] %v254
                %v256 = vld [vmem:[%s252 + $0x8] sm:$0xff]
                %257 = vst [vmem:[%s253 + $0x8] sm:$0xff] %v256
                %v258 = vld [vmem:[%s252 + $0x40] sm:$0xff]
                %259 = vst [vmem:[%s253 + $0x10] sm:$0xff] %v258
                %v260 = vld [vmem:[%s252 + $0x48] sm:$0xff]
                %261 = vst [vmem:[%s253 + $0x18] sm:$0xff] %v260
                %v262 = vld [vmem:[%s252 + $0x80] sm:$0xff]
                %263 = vst [vmem:[%s253 + $0x20] sm:$0xff] %v262
                %v264 = vld [vmem:[%s252 + $0x88] sm:$0xff]
                %265 = vst [vmem:[%s253 + $0x28] sm:$0xff] %v264
              $region64: #{fused_forward.3} parent=58 // loop_footer
                %s251 = sadd.s32 1, %s247
              $region65: #{fused_forward.3} parent=58 // loop_footer_branch
                %246 = sbr.rel target = $region61
              $region66: #{fused_forward.3} parent=58 // loop_exit
                _
            $region59: #{fused_forward.3} parent=54 // pred_fallthru
              _
            // Predicated region
            $region67: #{fused_forward.3} parent=54 // pred_check
              _
            $region68: #{fused_forward.3} parent=54 // pred_check_branch
              %267 = sbr.rel target = $region70
            $region69: #{fused_forward.3} parent=54 // pred_region
              _
            $region70: #{fused_forward.3} parent=54 // pred_fallthru
              _
          $region55: #{fused_forward.3} parent=50 // pred_fallthru
            _
          %268 = vnop
        $region51: #{fused_forward.3} parent=19 // pred_fallthru
          _
      $region20: #{fused_forward.3} parent=5 // pred_fallthru
        _
      %p269 = scmp.le.s32.totalorder 1, %s10
      %p270 = scmp.lt.s32.totalorder %s10, 9
      %p271 = pnand %p269, %p270
      %p272 = pneg %p271
      // Predicated region
      $region71: #{fused_forward.3} parent=5 // pred_check
        _
      $region72: #{fused_forward.3} parent=5 // pred_check_branch
        %274 = sbr.rel (%p271) target = $region74
      $region73: #{fused_forward.3} parent=5 // pred_region
        %s275 = ssub.s32 %s10, 1
        %s276 = sand.u32 %s84, 1
        %s277 = sand.u32 %s84, 1
        %s278 = smul.addr %s277, 80
        %s279 = scalar_lea.vmem [#allocation2], %s278
        // Predicated region
        $region75: #{fused_forward.3} parent=73 // pred_check
          %p280 = pneg %p97
        $region76: #{fused_forward.3} parent=73 // pred_check_branch
          %282 = sbr.rel (%p280) target = $region78
        $region77: #{fused_forward.3} parent=73 // pred_region
          _
        $region78: #{fused_forward.3} parent=73 // pred_fallthru
          _
        %s283 = sand.u32 %s112, 1
        %s284 = sand.u32 %s112, 1
        %s285 = smul.addr %s284, 48
        %s286 = scalar_lea.vmem [#allocation3], %s285
        // Predicated region
        $region79: #{fused_forward.3} parent=73 // pred_check
          %p287 = pneg %p125
        $region80: #{fused_forward.3} parent=73 // pred_check_branch
          %289 = sbr.rel (%p287) target = $region82
        $region81: #{fused_forward.3} parent=73 // pred_region
          _
        $region82: #{fused_forward.3} parent=73 // pred_fallthru
          _
        %p290 = scmp.lt.s32.totalorder %s19, 1
        %s291 = scalar_select %p290, %s19, 1
        %s292 = smul.addr %s291, 3
        %s293 = smul.addr %s292, 8
        %s294 = scalar_lea.vmem %s0, %s293
        %p295 = pneg %p48
        %p296 = pneg %p45
        %p297 = pneg %p69
        %p298 = pneg %p66
        %s299 = sand.u32 %s84, 1
        %s300 = sand.u32 %s84, 1
        %s301 = smul.addr %s300, 80
        %s302 = scalar_lea.vmem [#allocation2], %s301
        %p303 = pneg %p97
        %p304 = pneg %p94
        %s305 = sand.u32 %s112, 1
        %s306 = sand.u32 %s112, 1
        %s307 = smul.addr %s306, 48
        %s308 = scalar_lea.vmem [#allocation3], %s307
        %p309 = pneg %p125
        %p310 = pneg %p122
        %p311 = pneg %p153
        %p312 = pneg %p150
        %s313 = sand.u32 %s140, 1
        %s314 = sand.u32 %s140, 1
        %s315 = smul.addr %s314, 48
        %s316 = scalar_lea.vmem [#allocation4], %s315
        %p317 = scmp.lt.s32.totalorder %s19, 1
        %s318 = scalar_select %p317, %s19, 1
        %s319 = smul.addr %s318, 3
        %s320 = smul.addr %s319, 8
        %s321 = scalar_lea.vmem %s0, %s320
        %s322 = smul.u32 2, %s20
        %s323 = smul.u32 2, %s20
        %s324 = smul.u32 2, %s20
        %v325 = vld [vmem:[%s321] sm:$0xff]
        %v326 = vld [vmem:[%s321 + $0x8] sm:$0xff]
        %v327 = vld [vmem:[%s321 + $0x10] sm:$0xff]
        %v328 = vld [vmem:[%s279] sm:$0xff]
        %v329 = vld [vmem:[%s279 + $0x8] sm:$0xff]
        %v330 = vld [vmem:[%s279 + $0x10] sm:$0xff]
        %v331 = vld [vmem:[%s279 + $0x18] sm:$0xff]
        %v332 = vld [vmem:[%s279 + $0x20] sm:$0xff]
        %v333 = vld [vmem:[%s279 + $0x28] sm:$0xff]
        %v334 = vld [vmem:[%s279 + $0x30] sm:$0xff]
        %v335 = vld [vmem:[%s279 + $0x38] sm:$0xff]
        %v336 = vld [vmem:[%s279 + $0x40] sm:$0xff]
        %v337 = vld [vmem:[%s279 + $0x48] sm:$0xff]
        %vm338 = vcmask 326656
        %v340 = vsel %vm338, %v325, 0
        %v343 = vsel %vm338, %v326, 0
        %v346 = vsel %vm338, %v327, 0
        %348 = vmatpush.msra.mxu0 0.0
        %349 = vmatpush.msra.mxu0 0.0
        %350 = vmatpush.msra.mxu0 0.0
        %351 = vmatpush.msra.mxu0 0.0
        %352 = vmatpush.msra.mxu0 0.0
        %353 = vmatpush.msra.mxu0 0.0
        %354 = vmatpush.msra.mxu0 0.0
        %355 = vmatpush.msra.mxu0 0.0
        %356 = vmatpush.msra.mxu0 0.0
        %357 = vmatpush.msra.mxu0 0.0
        %358 = vmatpush.msra.mxu0 0.0
        %359 = vmatpush.msra.mxu0 %v336
        %360 = vmatpush.msra.mxu0 %v334
        %361 = vmatpush.msra.mxu0 %v332
        %362 = vmatpush.msra.mxu0 %v330
        %363 = vmatpush.msra.mxu0 %v328
        %364 = vmatmul.f32.gmra.mxu0 %v340
        %v365 = vpop.f32.mrf.mxu0
        %v366 = vadd.f32 0.0, %v365
        %367 = vmatmul.f32.gmra.mxu0 %v343
        %v368 = vpop.f32.mrf.mxu0
        %v369 = vadd.f32 0.0, %v368
        %370 = vmatmul.f32.gmra.mxu0 %v346
        %v371 = vpop.f32.mrf.mxu0
        %v372 = vadd.f32 0.0, %v371
        %373 = vdwg.mxu0
        %374 = vmatpush.msra.mxu0 0.0
        %375 = vmatpush.msra.mxu0 0.0
        %376 = vmatpush.msra.mxu0 0.0
        %377 = vmatpush.msra.mxu0 0.0
        %378 = vmatpush.msra.mxu0 0.0
        %379 = vmatpush.msra.mxu0 0.0
        %380 = vmatpush.msra.mxu0 0.0
        %381 = vmatpush.msra.mxu0 0.0
        %382 = vmatpush.msra.mxu0 0.0
        %383 = vmatpush.msra.mxu0 0.0
        %384 = vmatpush.msra.mxu0 0.0
        %385 = vmatpush.msra.mxu0 %v337
        %386 = vmatpush.msra.mxu0 %v335
        %387 = vmatpush.msra.mxu0 %v333
        %388 = vmatpush.msra.mxu0 %v331
        %389 = vmatpush.msra.mxu0 %v329
        %390 = vmatmul.f32.gmra.mxu0 %v340
        %v391 = vpop.f32.mrf.mxu0
        %v392 = vadd.f32 0.0, %v391
        %393 = vmatmul.f32.gmra.mxu0 %v343
        %v394 = vpop.f32.mrf.mxu0
        %v395 = vadd.f32 0.0, %v394
        %396 = vmatmul.f32.gmra.mxu0 %v346
        %v397 = vpop.f32.mrf.mxu0
        %v398 = vadd.f32 0.0, %v397
        %399 = vdwg.mxu0
        %v400 = vld [vmem:[%s286] sm:$0xff]
        %v401 = vld [vmem:[%s286 + $0x8] sm:$0xff]
        %v402 = vld [vmem:[%s286 + $0x10] sm:$0xff]
        %v403 = vld [vmem:[%s286 + $0x18] sm:$0xff]
        %v404 = vld [vmem:[%s286 + $0x20] sm:$0xff]
        %v405 = vld [vmem:[%s286 + $0x28] sm:$0xff]
        %v406 = vadd.f32 %v400, %v366
        %v407 = vadd.f32 %v401, %v392
        %v408 = vadd.f32 %v402, %v369
        %v409 = vadd.f32 %v403, %v395
        %v410 = vadd.f32 %v404, %v372
        %v411 = vadd.f32 %v405, %v398
        %v412 = vld [vmem:[%s1] sm:$0xff]
        %v413 = vld [vmem:[%s1 + $0x8] sm:$0xff]
        %v414 = vld [vmem:[%s1 + $0x10] sm:$0xff]
        %416 = vset.pattern.permute.xlu0 0
        %417 = vperm.xlu0 %416, %v412
        %v418 = vpop.permute.xlu0 %417
        %421 = vset.pattern.permute.xlu0 0
        %422 = vperm.xlu0 %421, %v413
        %v423 = vpop.permute.xlu0 %422
        %426 = vset.pattern.permute.xlu0 0
        %427 = vperm.xlu0 %426, %v414
        %v428 = vpop.permute.xlu0 %427
        %v430 = vadd.f32 %v406, %v418
        %v431 = vadd.f32 %v407, %v418
        %v432 = vadd.f32 %v408, %v423
        %v433 = vadd.f32 %v409, %v423
        %v434 = vadd.f32 %v410, %v428
        %v435 = vadd.f32 %v411, %v428
        %436 = vst [vmem:[%s316] sm:$0xff] %v430
        %437 = vst [vmem:[%s316 + $0x8] sm:$0xff] %v431
        %438 = vst [vmem:[%s316 + $0x10] sm:$0xff] %v432
        %439 = vst [vmem:[%s316 + $0x18] sm:$0xff] %v433
        %440 = vst [vmem:[%s316 + $0x20] sm:$0xff] %v434
        %441 = vst [vmem:[%s316 + $0x28] sm:$0xff] %v435
        %s442 = sand.u32 %s140, 1
        %s443 = sand.u32 %s140, 1
        %s444 = smul.addr %s443, 48
        %s445 = scalar_lea.vmem [#allocation4], %s444
        // Predicated region
        $region83: #{fused_forward.3} parent=73 // pred_check
          %p446 = pneg %p150
        $region84: #{fused_forward.3} parent=73 // pred_check_branch
          %448 = sbr.rel (%p446) target = $region86
        $region85: #{fused_forward.3} parent=73 // pred_region
          %s449 = smul.u32 2, %s20
          %s450 = smul.addr %s19, 24
          %s451 = sadd.s32 %s449, %s450
          %s452 = smul.addr %s451, 8
          %s453 = scalar_lea.vmem %s4, %s452
          // Predicated region
          $region87: #{fused_forward.3} parent=85 // pred_check
            _
          $region88: #{fused_forward.3} parent=85 // pred_check_branch
            %455 = sbr.rel (0) target = $region90
          $region89: #{fused_forward.3} parent=85 // pred_region
            // Predicated region
            $region91: #{fused_forward.3} parent=89 // pred_check
              _
            $region92: #{fused_forward.3} parent=89 // pred_check_branch
              %457 = sbr.rel (0) target = $region94
            $region93: #{fused_forward.3} parent=89 // pred_region
              loop: start=0, step=1, limit=1
              $region95: #{fused_forward.3} parent=93 // loop_pre_header
                _
              $region96: #{fused_forward.3} parent=93 // loop_header
                %s459 = sphi 0, %s463
                %p460 = scmp.ge.s32.totalorder %s459, 1
                %s464 = sphi %s445, %s445
                %s465 = sphi %s453, %s453
              $region97: #{fused_forward.3} parent=93 // loop_header_branch
                %462 = sbr.rel (%p460) target = $region101
              $region98: #{fused_forward.3} parent=93 // loop_body
                %v466 = vld [vmem:[%s464] sm:$0xff]
                %467 = vst [vmem:[%s465] sm:$0xff] %v466
                %v468 = vld [vmem:[%s464 + $0x8] sm:$0xff]
                %469 = vst [vmem:[%s465 + $0x8] sm:$0xff] %v468
                %v470 = vld [vmem:[%s464 + $0x10] sm:$0xff]
                %471 = vst [vmem:[%s465 + $0x40] sm:$0xff] %v470
                %v472 = vld [vmem:[%s464 + $0x18] sm:$0xff]
                %473 = vst [vmem:[%s465 + $0x48] sm:$0xff] %v472
                %v474 = vld [vmem:[%s464 + $0x20] sm:$0xff]
                %475 = vst [vmem:[%s465 + $0x80] sm:$0xff] %v474
                %v476 = vld [vmem:[%s464 + $0x28] sm:$0xff]
                %477 = vst [vmem:[%s465 + $0x88] sm:$0xff] %v476
              $region99: #{fused_forward.3} parent=93 // loop_footer
                %s463 = sadd.s32 1, %s459
              $region100: #{fused_forward.3} parent=93 // loop_footer_branch
                %458 = sbr.rel target = $region96
              $region101: #{fused_forward.3} parent=93 // loop_exit
                _
            $region94: #{fused_forward.3} parent=89 // pred_fallthru
              _
            // Predicated region
            $region102: #{fused_forward.3} parent=89 // pred_check
              _
            $region103: #{fused_forward.3} parent=89 // pred_check_branch
              %479 = sbr.rel target = $region105
            $region104: #{fused_forward.3} parent=89 // pred_region
              _
            $region105: #{fused_forward.3} parent=89 // pred_fallthru
              _
          $region90: #{fused_forward.3} parent=85 // pred_fallthru
            _
          %480 = vnop
        $region86: #{fused_forward.3} parent=73 // pred_fallthru
          _
      $region74: #{fused_forward.3} parent=5 // pred_fallthru
        _
      %p481 = scmp.le.s32.totalorder 2, %s10
      // Predicated region
      $region106: #{fused_forward.3} parent=5 // pred_check
        %p482 = pneg %p481
      $region107: #{fused_forward.3} parent=5 // pred_check_branch
        %484 = sbr.rel (%p482) target = $region109
      $region108: #{fused_forward.3} parent=5 // pred_region
        %s485 = ssub.s32 %s10, 2
        // Predicated region
        $region110: #{fused_forward.3} parent=108 // pred_check
          %p486 = pneg %p156
        $region111: #{fused_forward.3} parent=108 // pred_check_branch
          %488 = sbr.rel (%p486) target = $region113
        $region112: #{fused_forward.3} parent=108 // pred_region
          %s489 = sand.u32 %s141, 1
          %s490 = sand.u32 %s141, 1
          %s491 = smul.addr %s490, 48
          %s492 = scalar_lea.vmem [#allocation4], %s491
        $region113: #{fused_forward.3} parent=108 // pred_fallthru
          _
      $region109: #{fused_forward.3} parent=5 // pred_fallthru
        _
    $region6: #{fused_forward.3} parent=1 // loop_footer
      %s14 = sadd.s32 1, %s10
    $region7: #{fused_forward.3} parent=1 // loop_footer_branch
      %9 = sbr.rel target = $region3
    $region8: #{fused_forward.3} parent=1 // loop_exit
      _

</llo_original>
